<compile_context>
chip_gen: v5e
topology: v5e:2x2
jax: 0.10.0
libtpu: 0.0.40
codegen_flags: <defaults>
</compile_context>

<pallas_src>
import math

import jax
import jax.numpy as jnp
import numpy as np
from jax.experimental import pallas as pl
from jax.experimental.pallas import tpu as pltpu


# ----------------------------------------------------------------------------
# Per-decode-step Pallas kernel: fused GRU cell + online-softmax attention.
# grid = (batch_tiles, s_tiles);   K/V are precomputed (see precompute_kv).
# ----------------------------------------------------------------------------
def _decoder_step_kernel(x_ref, h_ref, kt_ref, v_ref, mask_ref,
                         wi3_ref, wh3_ref, bx3_ref, bhn_ref,
                         ch_ref, sc_ref, lse_ref,
                         h_sc, m_sc, l_sc, acc_sc):
    TB, H = x_ref.shape
    s_idx = pl.program_id(1)

    # ---- first S tile: run the fused GRU cell once, init softmax state -----
    @pl.when(s_idx == 0)
    def _():
        cdt = wi3_ref.dtype
        x = x_ref[...]                                  # (TB, H) f32
        h = h_ref[...]                                  # (TB, H) f32
        # fused gate pre-activations, column layout [ r | z | n ] (no zero pads)
        gx = jnp.dot(x.astype(cdt), wi3_ref[...],
                     preferred_element_type=jnp.float32) + bx3_ref[...]
        gh = jnp.dot(h.astype(cdt), wh3_ref[...],
                     preferred_element_type=jnp.float32)
        r = jax.nn.sigmoid(gx[:, 0:H] + gh[:, 0:H])
        z = jax.nn.sigmoid(gx[:, H:2 * H] + gh[:, H:2 * H])
        n = jnp.tanh(gx[:, 2 * H:3 * H] + r * (gh[:, 2 * H:3 * H] + bhn_ref[...]))
        h_sc[...] = (1.0 - z) * n + z * h               # new GRU hidden
        m_sc[...] = jnp.full_like(m_sc, -1e30)          # finite sentinel (no inf-inf NaN)
        l_sc[...] = jnp.zeros_like(l_sc)
        acc_sc[...] = jnp.zeros_like(acc_sc)

    # ---- every S tile: scores + online-softmax update -----------------------
    kt = kt_ref[...]                                    # (TB, H, St); pre-scaled by 1/sqrt(H)
    q3 = h_sc[...].astype(kt.dtype)[:, None, :]         # (TB, 1, H)
    scores = (jnp.einsum('bqh,bhs->bqs', q3, kt,
                         preferred_element_type=jnp.float32)[:, 0, :]
              + mask_ref[...])                          # (TB, St) f32
    sc_ref[...] = scores                                # attn_outputs tile (pre-softmax, post-mask)

    m_prev = m_sc[...]
    m_new = jnp.maximum(m_prev, jnp.max(scores, axis=-1, keepdims=True))
    alpha = jnp.exp(m_prev - m_new)
    p = jnp.exp(scores - m_new)                         # (TB, St)
    l_sc[...] = alpha * l_sc[...] + jnp.sum(p, axis=-1, keepdims=True)
    acc_sc[...] = alpha * acc_sc[...] + jnp.einsum(
        'bqs,bsh->bqh', p.astype(v_ref.dtype)[:, None, :], v_ref[...],
        preferred_element_type=jnp.float32)[:, 0, :]
    m_sc[...] = m_new

    # ---- last S tile: finalize context / hidden / logsumexp -----------------
    @pl.when(s_idx == pl.num_programs(1) - 1)
    def _():
        denom = jnp.maximum(l_sc[...], 1e-30)           # guard fully-masked rows
        ctx = acc_sc[...] / denom                       # exact divide (softmax parity)
        ch_ref[...] = jnp.concatenate([ctx, h_sc[...]], axis=-1)   # one lane-dense store
        lse_ref[...] = m_sc[...] + jnp.log(denom)       # per-row logsumexp
    # TODO(synk): for topk==1 the row argmax could also be emitted here to
    # avoid re-reading scores for lax.top_k in the wrapper.


# ----------------------------------------------------------------------------
# Parameter init (deterministic, PyTorch-like uniform(-1/sqrt(H), 1/sqrt(H)))
# ----------------------------------------------------------------------------
def init_params(key, hidden_size):
    ks = jax.random.split(key, 8)
    bound = 1.0 / math.sqrt(hidden_size)
    u = lambda k, shape: jax.random.uniform(k, shape, jnp.float32, -bound, bound)
    return dict(
        w_key=u(ks[0], (hidden_size, hidden_size)),      # nn.Linear weight (out, in)
        b_key=u(ks[1], (hidden_size,)),
        w_value=u(ks[2], (hidden_size, hidden_size)),
        b_value=u(ks[3], (hidden_size,)),
        w_ih=u(ks[4], (3 * hidden_size, hidden_size)),   # GRU weight_ih_l0 (r|z|n)
        w_hh=u(ks[5], (3 * hidden_size, hidden_size)),   # GRU weight_hh_l0 (r|z|n)
        b_ih=u(ks[6], (3 * hidden_size,)),
        b_hh=u(ks[7], (3 * hidden_size,)),
    )


# ----------------------------------------------------------------------------
# One-time weight preparation (hoisted OUT of the per-decode-step path)
# ----------------------------------------------------------------------------
def prepare_params(params, gru_dtype=jnp.float32):
    H = params["w_key"].shape[0]
    b_ih, b_hh = params["b_ih"], params["b_hh"]
    # Fused GRU weights, column layout [ r | z | n ] -> (H, 3H), NO zero pads.
    wi3 = params["w_ih"].T.astype(gru_dtype)
    wh3 = params["w_hh"].T.astype(gru_dtype)
    # r/z biases from both sides folded together; n keeps bh_n separate
    # (it must be added before the reset-gate multiply, per PyTorch GRU).
    bx3 = jnp.concatenate([b_ih[:2 * H] + b_hh[:2 * H], b_ih[2 * H:]]).reshape(1, 3 * H)
    bhn = b_hh[2 * H:].reshape(1, H)
    return dict(
        wi3=wi3, wh3=wh3,
        bx3=bx3.astype(jnp.float32), bhn=bhn.astype(jnp.float32),
        # K/V projection weights, consumed once per sequence by precompute_kv.
        wk=params["w_key"].T, bk=params["b_key"],
        wv=params["w_value"].T, bv=params["b_value"],
    )


def precompute_kv(prepared, encoder_outputs, kv_dtype=jnp.bfloat16):
    """One-time K/V projection: encoder_outputs never change across decode
    steps, so this runs once per sequence (plain XLA matmul).  K is returned
    pre-transposed to (B, H, S) and pre-scaled by 1/sqrt(H) so the step kernel
    needs no in-kernel transpose/scale; bf16 storage halves per-step HBM traffic."""
    H = prepared["wk"].shape[0]
    k = jnp.einsum('bsh,hk->bsk', encoder_outputs, prepared["wk"]) + prepared["bk"]
    v = jnp.einsum('bsh,hk->bsk', encoder_outputs, prepared["wv"]) + prepared["bv"]
    k_t = jnp.swapaxes(k, 1, 2) * (1.0 / math.sqrt(H))
    return k_t.astype(kv_dtype), v.astype(kv_dtype)


def evidence_sentence_index_to_list(evidence_sentence_index):
    """Host-side conversion to the PyTorch list-of-lists format.
    Call ONCE at the end of decoding (avoids a per-step host sync)."""
    return [list(map(int, row)) for row in jax.device_get(evidence_sentence_index)]


# ----------------------------------------------------------------------------
# Tile selection / VMEM budgeting
# ----------------------------------------------------------------------------
def _pick_batch_block(B, cap=128):
    """Largest multiple-of-8 divisor of B (<= cap); prefer >=2 grid steps so
    the "parallel" batch axis can shard across v7x's two TensorCores."""
    if B <= 8 or B % 8 != 0:
        return B
    divisors = [d for d in range(8, min(cap, B) + 1, 8) if B % d == 0]
    if not divisors:
        return B
    two_step = [d for d in divisors if B // d >= 2]
    return max(two_step) if two_step else max(divisors)


def _pick_s_block(S, cap=512):
    """Full S when small; else the largest <=cap multiple of 128 dividing S."""
    if S <= cap or S % 128 != 0:
        return S
    tiles = [t for t in range(128, cap + 1, 128) if S % t == 0]
    return max(tiles) if tiles else S


def _vmem_limit_bytes(TB, St, H, kv_bytes):
    io = (2 * TB * H * 4                       # x, h
          + 2 * TB * St * H * kv_bytes         # K^T, V tiles
          + TB * St * 4                        # mask
          + TB * 2 * H * 4 + TB * St * 4 + TB * 128 * 4)   # outputs
    weights = (6 * H * H + 4 * H) * 4          # single-buffered GRU weights
    scratch = (2 * TB * H + 2 * TB * 128) * 4
    est = 2 * io + weights + scratch           # double-buffered I/O
    return int(min(60 * 2 ** 20, max(32 * 2 ** 20, 2 * est)))


# ----------------------------------------------------------------------------
# Forward wrapper (mirrors BeamSearchAttentionDecoder.forward, jittable)
# ----------------------------------------------------------------------------
def beam_search_attention_decoder_forward(
        prepared, last_hidden, decoder_inputs, encoder_outputs,
        attention_scores, attention_mask,
        evidence_scores=None, evidence_sentence_index=None, topk=1,
        kv=None, kv_dtype=jnp.bfloat16, batch_block=None, s_block=None):
    """For decode loops, call precompute_kv() once per sequence and pass
    kv=(k_t, v); encoder_outputs is then only used for its shape."""
    if kv is None:   # fallback keeps the original module semantics
        kv = precompute_kv(prepared, encoder_outputs, kv_dtype=kv_dtype)
    k_t, v = kv
    B, H, S = k_t.shape

    x = decoder_inputs[:, 0, :]                          # (B, H)
    h_prev = last_hidden[0]                              # (B, H)
    mask2d = attention_mask.reshape(B, S).astype(jnp.float32)

    TB = batch_block if batch_block is not None else _pick_batch_block(B)
    St = s_block if s_block is not None else _pick_s_block(S)
    grid = (B // TB, S // St)

    # Constant-index weight blocks: single-buffered (no point double-buffering).
    wspec = lambda shape: pl.BlockSpec(shape, lambda b, s: (0, 0),
                                       pipeline_mode=pl.Buffered(1))

    ch, scores, lse = pl.pallas_call(
        _decoder_step_kernel,
        out_shape=(
            jax.ShapeDtypeStruct((B, 2 * H), jnp.float32),   # [ctx | h_new]
            jax.ShapeDtypeStruct((B, S), jnp.float32),       # attn_outputs (pre-softmax + mask)
            jax.ShapeDtypeStruct((B, 1), jnp.float32),       # per-row logsumexp
        ),
        grid=grid,
        in_specs=[
            pl.BlockSpec((TB, H), lambda b, s: (b, 0)),          # x
            pl.BlockSpec((TB, H), lambda b, s: (b, 0)),          # h_prev
            pl.BlockSpec((TB, H, St), lambda b, s: (b, 0, s)),   # K^T (pre-scaled)
            pl.BlockSpec((TB, St, H), lambda b, s: (b, s, 0)),   # V
            pl.BlockSpec((TB, St), lambda b, s: (b, s)),         # additive mask
            wspec((H, 3 * H)),                                   # fused GRU W_i
            wspec((H, 3 * H)),                                   # fused GRU W_h
            wspec((1, 3 * H)),                                   # fused GRU bias (x side)
            wspec((1, H)),                                       # b_hn
        ],
        out_specs=(
            pl.BlockSpec((TB, 2 * H), lambda b, s: (b, 0)),
            pl.BlockSpec((TB, St), lambda b, s: (b, s)),
            pl.BlockSpec((TB, 1), lambda b, s: (b, 0)),
        ),
        scratch_shapes=[
            pltpu.VMEM((TB, H), jnp.float32),    # h_new
            pltpu.VMEM((TB, 1), jnp.float32),    # running max
            pltpu.VMEM((TB, 1), jnp.float32),    # running denom
            pltpu.VMEM((TB, H), jnp.float32),    # context accumulator
        ],
        compiler_params=pltpu.CompilerParams(
            dimension_semantics=("parallel", "arbitrary"),
            vmem_limit_bytes=_vmem_limit_bytes(TB, St, H, k_t.dtype.itemsize),
        ),
    )(x, h_prev, k_t, v, mask2d,
      prepared["wi3"], prepared["wh3"], prepared["bx3"], prepared["bhn"])

    context = ch[:, :H]
    h_new = ch[:, H:]
    result = context[:, None, :]                         # (B, 1, H)
    hidden = h_new[None, :, :]                           # (1, B, H)
    attn_outputs = scores[:, None, :]                    # (B, 1, S)

    # ---- beam-search bookkeeping (device-side; softmax never hits HBM) ------
    # softmax is monotonic => top-k over raw scores == top-k over alignments;
    # the selected alignment prob is exp(score - lse), so -log(prob) = lse-score (exact).
    vals, idxs = jax.lax.top_k(scores.reshape(B // topk, topk, S), topk)
    lse3 = lse.reshape(B // topk, topk, 1)
    neg_log_align = (lse3 - vals).reshape(B, topk)       # == -log(softmax top-k)
    sentences = idxs.reshape(B, topk)

    if evidence_scores is None:
        row_indices = jnp.arange(0, B, topk)
        evidence_scores = neg_log_align[row_indices].reshape(-1)     # (B,)
        evidence_sentences = sentences[row_indices].reshape(-1)      # (B,)
        evidence_sentence_index = evidence_sentences[:, None].astype(jnp.int32)
        attention_scores = attn_outputs[None]                        # (1, B, 1, S)
    else:
        # Beam re-ranking: add the new -log p to each path cost and keep the
        # best `topk` expansions per real batch element (ascending cost).
        log_scores = neg_log_align + evidence_scores[:, None]        # (B, topk)
        flat = log_scores.reshape(B // topk, topk * topk)
        order = jnp.argsort(flat, axis=-1)[:, :topk]                 # (B//topk, topk)
        sel_cost = jnp.take_along_axis(flat, order, axis=-1)
        src_beam = order // topk                                     # source beam in group
        src_rank = order % topk                                      # which top-k sentence
        s_flat = (src_beam + jnp.arange(B // topk)[:, None] * topk).reshape(-1)  # (B,)
        r_flat = src_rank.reshape(-1)

        evidence_scores = sel_cost.reshape(-1)                       # (B,)
        sel_sent = sentences[s_flat, r_flat].astype(jnp.int32)       # (B,)
        evidence_sentence_index = jnp.concatenate(
            [evidence_sentence_index[s_flat].astype(jnp.int32), sel_sent[:, None]],
            axis=1)
        attention_scores = jnp.concatenate(
            [attention_scores[:, s_flat], attn_outputs[s_flat][None]], axis=0)
        result = result[s_flat]
        hidden = hidden[:, s_flat]
        attention_mask = attention_mask[s_flat]

    # TODO(synk): for H or S not multiples of 128 the in-kernel gate/score
    # slices fall inside a vreg; pad H/S to 128 for production deployments.
    return (result, hidden, evidence_sentence_index, attention_scores,
            attention_mask, evidence_scores)


# ----------------------------------------------------------------------------
# Pure-JAX reference (mirrors the PyTorch module's math, f32)
# ----------------------------------------------------------------------------
def reference_step(params, last_hidden, decoder_inputs, encoder_outputs, attention_mask):
    H = params["w_key"].shape[0]
    key_enc = jnp.einsum('bsh,kh->bsk', encoder_outputs, params["w_key"]) + params["b_key"]
    val_enc = jnp.einsum('bsh,kh->bsk', encoder_outputs, params["w_value"]) + params["b_value"]
    x = decoder_inputs[:, 0]
    h = last_hidden[0]
    gi = x @ params["w_ih"].T + params["b_ih"]
    gh = h @ params["w_hh"].T + params["b_hh"]
    r = jax.nn.sigmoid(gi[:, :H] + gh[:, :H])
    z = jax.nn.sigmoid(gi[:, H:2 * H] + gh[:, H:2 * H])
    n = jnp.tanh(gi[:, 2 * H:] + r * gh[:, 2 * H:])
    h_new = (1.0 - z) * n + z * h
    attn = (jnp.einsum('bh,bsh->bs', h_new, key_enc) / math.sqrt(H))[:, None, :] + attention_mask
    align = jax.nn.softmax(attn, axis=-1)
    ctx = jnp.einsum('bqs,bsh->bqh', align, val_enc)
    return ctx, h_new[None], attn, align


# ----------------------------------------------------------------------------
if __name__ == "__main__":
    step = jax.jit(beam_search_attention_decoder_forward,
                   static_argnames=("topk", "kv_dtype", "batch_block", "s_block"))

    def run_case(B, S, H, topk, kv_dtype, s_block=None, mask_frac=0.0,
                 check=True, seed=0):
        key = jax.random.PRNGKey(seed)
        kp, kh, kx, ke, km = jax.random.split(key, 5)
        params = init_params(kp, H)
        prepared = prepare_params(params, gru_dtype=jnp.float32)
        last_hidden = jax.random.normal(kh, (1, B, H), jnp.float32)
        decoder_inputs = jax.random.normal(kx, (B, 1, H), jnp.float32)
        encoder_outputs = jax.random.normal(ke, (B, S, H), jnp.float32)
        attention_mask = jnp.where(jax.random.uniform(km, (B, 1, S)) < mask_frac,
                                   -1e9, 0.0).astype(jnp.float32)

        # One-time K/V precompute (hoisted out of the decode-step path).
        kv = precompute_kv(prepared, encoder_outputs, kv_dtype=kv_dtype)

        # ---- step 1 (evidence_scores is None branch) -------------------------
        outs = step(prepared, last_hidden, decoder_inputs, encoder_outputs,
                    None, attention_mask, evidence_scores=None,
                    evidence_sentence_index=None, topk=topk, kv=kv,
                    kv_dtype=kv_dtype, s_block=s_block)
        result, hidden, ev_idx, attn_scores, mask_out, ev_scores = outs
        jax.block_until_ready((result, hidden, ev_idx, attn_scores, ev_scores))

        assert result.shape == (B, 1, H)
        assert hidden.shape == (1, B, H)
        assert attn_scores.shape == (1, B, 1, S)
        assert ev_scores.shape == (B,)
        assert ev_idx.shape == (B, 1)

        if check:
            ref_ctx, ref_hidden, ref_attn, ref_align = reference_step(
                params, last_hidden, decoder_inputs, encoder_outputs, attention_mask)
            np.testing.assert_allclose(result, ref_ctx, rtol=2e-3, atol=2e-3)
            np.testing.assert_allclose(hidden, ref_hidden, rtol=2e-3, atol=2e-3)
            np.testing.assert_allclose(attn_scores[0], ref_attn, rtol=2e-3, atol=2e-3)
            rvals, ridx = jax.lax.top_k(
                ref_align[:, 0, :].reshape(B // topk, topk, S), topk)
            rows = jnp.arange(0, B, topk)
            ref_ev = -jnp.log(rvals.reshape(B, topk)[rows]).reshape(-1)
            ref_sent = ridx.reshape(B, topk)[rows].reshape(-1)
            np.testing.assert_allclose(ev_scores, ref_ev, rtol=2e-3, atol=2e-3)
            np.testing.assert_array_equal(np.asarray(ev_idx[:, 0]), np.asarray(ref_sent))

        # ---- step 2 exercises the beam re-ranking (evidence not None) branch --
        outs2 = step(prepared, hidden, result, encoder_outputs,
                     attn_scores, mask_out, evidence_scores=ev_scores,
                     evidence_sentence_index=ev_idx, topk=topk, kv=kv,
                     kv_dtype=kv_dtype, s_block=s_block)
        result2, hidden2, ev_idx2, attn_scores2, mask2, ev_scores2 = outs2
        jax.block_until_ready((result2, hidden2, ev_idx2, attn_scores2, ev_scores2))
        assert result2.shape == (B, 1, H)
        assert hidden2.shape == (1, B, H)
        assert attn_scores2.shape == (2, B, 1, S)
        assert ev_idx2.shape == (B, 2)
        assert ev_scores2.shape == (B,)
        assert mask2.shape == (B, 1, S)

    # Small smoke test: single tile, exact f32 parity against the pure-JAX ref.
    run_case(B=8, S=8, H=32, topk=2, kv_dtype=jnp.float32, check=True)
    # Multi-tile case: (2 batch tiles) x (2 S tiles) exercises the online-softmax
    # accumulation, masking, and the "parallel" batch grid axis (f32 parity).
    run_case(B=16, S=256, H=128, topk=2, kv_dtype=jnp.float32, s_block=128,
             mask_frac=0.2, check=True)
    # bf16 K/V storage path (default deployment config; run-only).
    run_case(B=8, S=8, H=32, topk=2, kv_dtype=jnp.bfloat16, check=False)

    print("KERNEL_OK")
</pallas_src>

<mosaic_0001>
module attributes {stable_mosaic.version = 11 : i64} {
  func.func @_decoder_step_kernel(%arg0: i32, %arg1: i32, %arg2: memref<8x32xf32, #tpu.memory_space<vmem>>, %arg3: memref<8x32xf32, #tpu.memory_space<vmem>>, %arg4: memref<8x32x8xf32, #tpu.memory_space<vmem>>, %arg5: memref<8x8x32xf32, #tpu.memory_space<vmem>>, %arg6: memref<8x8xf32, #tpu.memory_space<vmem>>, %arg7: memref<32x96xf32, #tpu.memory_space<vmem>>, %arg8: memref<32x96xf32, #tpu.memory_space<vmem>>, %arg9: memref<1x96xf32, #tpu.memory_space<vmem>>, %arg10: memref<1x32xf32, #tpu.memory_space<vmem>>, %arg11: memref<8x64xf32, #tpu.memory_space<vmem>>, %arg12: memref<8x8xf32, #tpu.memory_space<vmem>>, %arg13: memref<8x1xf32, #tpu.memory_space<vmem>>, %arg14: memref<8x32xf32, #tpu.memory_space<vmem>>, %arg15: memref<8x1xf32, #tpu.memory_space<vmem>>, %arg16: memref<8x1xf32, #tpu.memory_space<vmem>>, %arg17: memref<8x32xf32, #tpu.memory_space<vmem>>) attributes {dimension_semantics = [#tpu.dimension_semantics<parallel>, #tpu.dimension_semantics<arbitrary>], iteration_bounds = array<i64: 1, 1>, scalar_prefetch = 0 : i64, scratch_operands = 4 : i64, tpu.core_type = #tpu.core_type<tc>, window_params = [{transform_indices = @transform_0, window_bounds = array<i64: 8, 32>}, {transform_indices = @transform_1, window_bounds = array<i64: 8, 32>}, {transform_indices = @transform_2, window_bounds = array<i64: 8, 32, 8>}, {transform_indices = @transform_3, window_bounds = array<i64: 8, 8, 32>}, {transform_indices = @transform_4, window_bounds = array<i64: 8, 8>}, {pipeline_mode = #tpu.pipeline_mode<synchronous>, transform_indices = @transform_5, window_bounds = array<i64: 32, 96>}, {pipeline_mode = #tpu.pipeline_mode<synchronous>, transform_indices = @transform_6, window_bounds = array<i64: 32, 96>}, {pipeline_mode = #tpu.pipeline_mode<synchronous>, transform_indices = @transform_7, window_bounds = array<i64: 1, 96>}, {pipeline_mode = #tpu.pipeline_mode<synchronous>, transform_indices = @transform_8, window_bounds = array<i64: 1, 32>}, {transform_indices = @transform_9, window_bounds = array<i64: 8, 64>}, {transform_indices = @transform_10, window_bounds = array<i64: 8, 8>}, {transform_indices = @transform_11, window_bounds = array<i64: 8, 1>}]} {
    %c0_i32 = arith.constant 0 : i32
    %0 = arith.cmpi eq, %arg1, %c0_i32 : i32
    %1 = arith.extui %0 : i1 to i32
    %c0_i32_0 = arith.constant 0 : i32
    %2 = arith.cmpi ne, %1, %c0_i32_0 : i32
    scf.if %2 {
      %c0_29 = arith.constant 0 : index
      %c0_30 = arith.constant 0 : index
      %39 = vector.load %arg2[%c0_29, %c0_30] : memref<8x32xf32, #tpu.memory_space<vmem>>, vector<8x32xf32>
      %c0_31 = arith.constant 0 : index
      %c0_32 = arith.constant 0 : index
      %40 = vector.load %arg3[%c0_31, %c0_32] : memref<8x32xf32, #tpu.memory_space<vmem>>, vector<8x32xf32>
      %c0_33 = arith.constant 0 : index
      %c0_34 = arith.constant 0 : index
      %41 = vector.load %arg7[%c0_33, %c0_34] : memref<32x96xf32, #tpu.memory_space<vmem>>, vector<32x96xf32>
      %cst_35 = arith.constant dense<0.000000e+00> : vector<8x96xf32>
      %42 = tpu.matmul %39, %41, %cst_35 {dimension_numbers = #tpu.dot_dimension_numbers<[1], [0], [0], [1], [0, 0, 1, 1], [], []>} : vector<8x32xf32>, vector<32x96xf32>, vector<8x96xf32> -> vector<8x96xf32>
      %c0_36 = arith.constant 0 : index
      %c0_37 = arith.constant 0 : index
      %43 = vector.load %arg9[%c0_36, %c0_37] : memref<1x96xf32, #tpu.memory_space<vmem>>, vector<1x96xf32>
      %44 = vector.broadcast %43 : vector<1x96xf32> to vector<8x96xf32>
      %45 = arith.addf %42, %44 : vector<8x96xf32>
      %c0_38 = arith.constant 0 : index
      %c0_39 = arith.constant 0 : index
      %46 = vector.load %arg8[%c0_38, %c0_39] : memref<32x96xf32, #tpu.memory_space<vmem>>, vector<32x96xf32>
      %cst_40 = arith.constant dense<0.000000e+00> : vector<8x96xf32>
      %47 = tpu.matmul %40, %46, %cst_40 {dimension_numbers = #tpu.dot_dimension_numbers<[1], [0], [0], [1], [0, 0, 1, 1], [], []>} : vector<8x32xf32>, vector<32x96xf32>, vector<8x96xf32> -> vector<8x96xf32>
      %48 = vector.extract_strided_slice %45 {offsets = [0, 0], sizes = [8, 32], strides = [1, 1]} : vector<8x96xf32> to vector<8x32xf32>
      %49 = vector.extract_strided_slice %47 {offsets = [0, 0], sizes = [8, 32], strides = [1, 1]} : vector<8x96xf32> to vector<8x32xf32>
      %50 = arith.addf %48, %49 : vector<8x32xf32>
      %51 = arith.negf %50 : vector<8x32xf32>
      %52 = math.exp %51 : vector<8x32xf32>
      %cst_41 = arith.constant 1.000000e+00 : f32
      %53 = vector.broadcast %cst_41 : f32 to vector<8x32xf32>
      %54 = arith.addf %53, %52 : vector<8x32xf32>
      %55 = arith.divf %53, %54 : vector<8x32xf32>
      %56 = vector.extract_strided_slice %45 {offsets = [0, 32], sizes = [8, 32], strides = [1, 1]} : vector<8x96xf32> to vector<8x32xf32>
      %57 = vector.extract_strided_slice %47 {offsets = [0, 32], sizes = [8, 32], strides = [1, 1]} : vector<8x96xf32> to vector<8x32xf32>
      %58 = arith.addf %56, %57 : vector<8x32xf32>
      %59 = arith.negf %58 : vector<8x32xf32>
      %60 = math.exp %59 : vector<8x32xf32>
      %cst_42 = arith.constant 1.000000e+00 : f32
      %61 = vector.broadcast %cst_42 : f32 to vector<8x32xf32>
      %62 = arith.addf %61, %60 : vector<8x32xf32>
      %63 = arith.divf %61, %62 : vector<8x32xf32>
      %64 = vector.extract_strided_slice %45 {offsets = [0, 64], sizes = [8, 32], strides = [1, 1]} : vector<8x96xf32> to vector<8x32xf32>
      %65 = vector.extract_strided_slice %47 {offsets = [0, 64], sizes = [8, 32], strides = [1, 1]} : vector<8x96xf32> to vector<8x32xf32>
      %c0_43 = arith.constant 0 : index
      %c0_44 = arith.constant 0 : index
      %66 = vector.load %arg10[%c0_43, %c0_44] : memref<1x32xf32, #tpu.memory_space<vmem>>, vector<1x32xf32>
      %67 = vector.broadcast %66 : vector<1x32xf32> to vector<8x32xf32>
      %68 = arith.addf %65, %67 : vector<8x32xf32>
      %69 = arith.mulf %55, %68 : vector<8x32xf32>
      %70 = arith.addf %64, %69 : vector<8x32xf32>
      %71 = math.tanh %70 : vector<8x32xf32>
      %cst_45 = arith.constant 1.000000e+00 : f32
      %72 = vector.broadcast %cst_45 : f32 to vector<8x32xf32>
      %73 = arith.subf %72, %63 : vector<8x32xf32>
      %74 = arith.mulf %73, %71 : vector<8x32xf32>
      %75 = arith.mulf %63, %40 : vector<8x32xf32>
      %76 = arith.addf %74, %75 : vector<8x32xf32>
      %c0_46 = arith.constant 0 : index
      %c0_47 = arith.constant 0 : index
      %77 = vector.load %arg14[%c0_46, %c0_47] : memref<8x32xf32, #tpu.memory_space<vmem>>, vector<8x32xf32>
      tpu.vector_store %arg14[%c0_46, %c0_47], %76 {strides = array<i32>} : memref<8x32xf32, #tpu.memory_space<vmem>>, vector<8x32xf32>,
      %cst_48 = arith.constant -1.000000e+30 : f32
      %78 = vector.broadcast %cst_48 : f32 to vector<8x1xf32>
      %c0_49 = arith.constant 0 : index
      %c0_50 = arith.constant 0 : index
      %79 = vector.load %arg15[%c0_49, %c0_50] : memref<8x1xf32, #tpu.memory_space<vmem>>, vector<8x1xf32>
      tpu.vector_store %arg15[%c0_49, %c0_50], %78 {strides = array<i32>} : memref<8x1xf32, #tpu.memory_space<vmem>>, vector<8x1xf32>,
      %cst_51 = arith.constant 0.000000e+00 : f32
      %80 = vector.broadcast %cst_51 : f32 to vector<8x1xf32>
      %c0_52 = arith.constant 0 : index
      %c0_53 = arith.constant 0 : index
      %81 = vector.load %arg16[%c0_52, %c0_53] : memref<8x1xf32, #tpu.memory_space<vmem>>, vector<8x1xf32>
      tpu.vector_store %arg16[%c0_52, %c0_53], %80 {strides = array<i32>} : memref<8x1xf32, #tpu.memory_space<vmem>>, vector<8x1xf32>,
      %cst_54 = arith.constant 0.000000e+00 : f32
      %82 = vector.broadcast %cst_54 : f32 to vector<8x32xf32>
      %c0_55 = arith.constant 0 : index
      %c0_56 = arith.constant 0 : index
      %83 = vector.load %arg17[%c0_55, %c0_56] : memref<8x32xf32, #tpu.memory_space<vmem>>, vector<8x32xf32>
      tpu.vector_store %arg17[%c0_55, %c0_56], %82 {strides = array<i32>} : memref<8x32xf32, #tpu.memory_space<vmem>>, vector<8x32xf32>,
    } else {
    }
    %c0 = arith.constant 0 : index
    %c0_1 = arith.constant 0 : index
    %c0_2 = arith.constant 0 : index
    %3 = vector.load %arg4[%c0, %c0_1, %c0_2] : memref<8x32x8xf32, #tpu.memory_space<vmem>>, vector<8x32x8xf32>
    %c0_3 = arith.constant 0 : index
    %c0_4 = arith.constant 0 : index
    %4 = vector.load %arg14[%c0_3, %c0_4] : memref<8x32xf32, #tpu.memory_space<vmem>>, vector<8x32xf32>
    %5 = vector.shape_cast %4 : vector<8x32xf32> to vector<8x1x32xf32>
    "tpu.trace_start"() <{level = 10 : i32, message = "bqh,bhs->bqs"}> : () -> ()
    %cst = arith.constant dense<0.000000e+00> : vector<8x1x8xf32>
    %6 = tpu.matmul %5, %3, %cst {dimension_numbers = #tpu.dot_dimension_numbers<[2], [1], [1], [2], [0, 0, 0, 1, 1, 2], [0], [0]>} : vector<8x1x32xf32>, vector<8x32x8xf32>, vector<8x1x8xf32> -> vector<8x1x8xf32>
    "tpu.trace_stop"() : () -> ()
    %7 = vector.shape_cast %6 : vector<8x1x8xf32> to vector<8x8xf32>
    %c0_5 = arith.constant 0 : index
    %c0_6 = arith.constant 0 : index
    %8 = vector.load %arg6[%c0_5, %c0_6] : memref<8x8xf32, #tpu.memory_space<vmem>>, vector<8x8xf32>
    %9 = arith.addf %7, %8 : vector<8x8xf32>
    %c0_7 = arith.constant 0 : index
    %c0_8 = arith.constant 0 : index
    %10 = vector.load %arg12[%c0_7, %c0_8] : memref<8x8xf32, #tpu.memory_space<vmem>>, vector<8x8xf32>
    tpu.vector_store %arg12[%c0_7, %c0_8], %9 {strides = array<i32>} : memref<8x8xf32, #tpu.memory_space<vmem>>, vector<8x8xf32>,
    %c0_9 = arith.constant 0 : index
    %c0_10 = arith.constant 0 : index
    %11 = vector.load %arg15[%c0_9, %c0_10] : memref<8x1xf32, #tpu.memory_space<vmem>>, vector<8x1xf32>
    %cst_11 = arith.constant dense<0xFF800000> : vector<8xf32>
    %12 = vector.multi_reduction <maximumf>, %9, %cst_11 [1] : vector<8x8xf32> to vector<8xf32>
    %13 = vector.shape_cast %12 : vector<8xf32> to vector<8x1xf32>
    %14 = arith.maximumf %11, %13 : vector<8x1xf32>
    %15 = arith.subf %11, %14 : vector<8x1xf32>
    %16 = math.exp %15 : vector<8x1xf32>
    %17 = vector.broadcast %14 : vector<8x1xf32> to vector<8x8xf32>
    %18 = arith.subf %9, %17 : vector<8x8xf32>
    %19 = math.exp %18 : vector<8x8xf32>
    %c0_12 = arith.constant 0 : index
    %c0_13 = arith.constant 0 : index
    %20 = vector.load %arg16[%c0_12, %c0_13] : memref<8x1xf32, #tpu.memory_space<vmem>>, vector<8x1xf32>
    %21 = arith.mulf %16, %20 : vector<8x1xf32>
    %cst_14 = arith.constant dense<0.000000e+00> : vector<8xf32>
    %22 = vector.multi_reduction <add>, %19, %cst_14 [1] : vector<8x8xf32> to vector<8xf32>
    %23 = vector.shape_cast %22 : vector<8xf32> to vector<8x1xf32>
    %24 = arith.addf %21, %23 : vector<8x1xf32>
    %c0_15 = arith.constant 0 : index
    %c0_16 = arith.constant 0 : index
    %25 = vector.load %arg16[%c0_15, %c0_16] : memref<8x1xf32, #tpu.memory_space<vmem>>, vector<8x1xf32>
    tpu.vector_store %arg16[%c0_15, %c0_16], %24 {strides = array<i32>} : memref<8x1xf32, #tpu.memory_space<vmem>>, vector<8x1xf32>,
    %c0_17 = arith.constant 0 : index
    %c0_18 = arith.constant 0 : index
    %26 = vector.load %arg17[%c0_17, %c0_18] : memref<8x32xf32, #tpu.memory_space<vmem>>, vector<8x32xf32>
    %27 = vector.broadcast %16 : vector<8x1xf32> to vector<8x32xf32>
    %28 = arith.mulf %27, %26 : vector<8x32xf32>
    %29 = vector.shape_cast %19 : vector<8x8xf32> to vector<8x1x8xf32>
    %c0_19 = arith.constant 0 : index
    %c0_20 = arith.constant 0 : index
    %c0_21 = arith.constant 0 : index
    %30 = vector.load %arg5[%c0_19, %c0_20, %c0_21] : memref<8x8x32xf32, #tpu.memory_space<vmem>>, vector<8x8x32xf32>
    "tpu.trace_start"() <{level = 10 : i32, message = "bqs,bsh->bqh"}> : () -> ()
    %cst_22 = arith.constant dense<0.000000e+00> : vector<8x1x32xf32>
    %31 = tpu.matmul %29, %30, %cst_22 {dimension_numbers = #tpu.dot_dimension_numbers<[2], [1], [1], [2], [0, 0, 0, 1, 1, 2], [0], [0]>} : vector<8x1x8xf32>, vector<8x8x32xf32>, vector<8x1x32xf32> -> vector<8x1x32xf32>
    "tpu.trace_stop"() : () -> ()
    %32 = vector.shape_cast %31 : vector<8x1x32xf32> to vector<8x32xf32>
    %33 = arith.addf %28, %32 : vector<8x32xf32>
    %c0_23 = arith.constant 0 : index
    %c0_24 = arith.constant 0 : index
    %34 = vector.load %arg17[%c0_23, %c0_24] : memref<8x32xf32, #tpu.memory_space<vmem>>, vector<8x32xf32>
    tpu.vector_store %arg17[%c0_23, %c0_24], %33 {strides = array<i32>} : memref<8x32xf32, #tpu.memory_space<vmem>>, vector<8x32xf32>,
    %c0_25 = arith.constant 0 : index
    %c0_26 = arith.constant 0 : index
    %35 = vector.load %arg15[%c0_25, %c0_26] : memref<8x1xf32, #tpu.memory_space<vmem>>, vector<8x1xf32>
    tpu.vector_store %arg15[%c0_25, %c0_26], %14 {strides = array<i32>} : memref<8x1xf32, #tpu.memory_space<vmem>>, vector<8x1xf32>,
    %c0_i32_27 = arith.constant 0 : i32
    %36 = arith.cmpi eq, %arg1, %c0_i32_27 : i32
    %37 = arith.extui %36 : i1 to i32
    %c0_i32_28 = arith.constant 0 : i32
    %38 = arith.cmpi ne, %37, %c0_i32_28 : i32
    scf.if %38 {
      %c0_29 = arith.constant 0 : index
      %c0_30 = arith.constant 0 : index
      %39 = vector.load %arg16[%c0_29, %c0_30] : memref<8x1xf32, #tpu.memory_space<vmem>>, vector<8x1xf32>
      %cst_31 = arith.constant 1.000000e-30 : f32
      %40 = vector.broadcast %cst_31 : f32 to vector<8x1xf32>
      %41 = arith.maximumf %39, %40 : vector<8x1xf32>
      %c0_32 = arith.constant 0 : index
      %c0_33 = arith.constant 0 : index
      %42 = vector.load %arg17[%c0_32, %c0_33] : memref<8x32xf32, #tpu.memory_space<vmem>>, vector<8x32xf32>
      %43 = vector.broadcast %41 : vector<8x1xf32> to vector<8x32xf32>
      %44 = arith.divf %42, %43 : vector<8x32xf32>
      %c0_34 = arith.constant 0 : index
      %c0_35 = arith.constant 0 : index
      %45 = vector.load %arg14[%c0_34, %c0_35] : memref<8x32xf32, #tpu.memory_space<vmem>>, vector<8x32xf32>
      %46 = tpu.concatenate %44, %45 in 1 : vector<8x32xf32>, vector<8x32xf32> -> vector<8x64xf32>
      %c0_36 = arith.constant 0 : index
      %c0_37 = arith.constant 0 : index
      %47 = vector.load %arg11[%c0_36, %c0_37] : memref<8x64xf32, #tpu.memory_space<vmem>>, vector<8x64xf32>
      tpu.vector_store %arg11[%c0_36, %c0_37], %46 {strides = array<i32>} : memref<8x64xf32, #tpu.memory_space<vmem>>, vector<8x64xf32>,
      %c0_38 = arith.constant 0 : index
      %c0_39 = arith.constant 0 : index
      %48 = vector.load %arg15[%c0_38, %c0_39] : memref<8x1xf32, #tpu.memory_space<vmem>>, vector<8x1xf32>
      %49 = math.log %41 : vector<8x1xf32>
      %50 = arith.addf %48, %49 : vector<8x1xf32>
      %c0_40 = arith.constant 0 : index
      %c0_41 = arith.constant 0 : index
      %51 = vector.load %arg13[%c0_40, %c0_41] : memref<8x1xf32, #tpu.memory_space<vmem>>, vector<8x1xf32>
      tpu.vector_store %arg13[%c0_40, %c0_41], %50 {strides = array<i32>} : memref<8x1xf32, #tpu.memory_space<vmem>>, vector<8x1xf32>,
    } else {
    }
    return
  }
  func.func @transform_0(%arg0: i32, %arg1: i32) -> (i32, i32) {
    %c0_i32 = arith.constant 0 : i32
    %c0_i32_0 = arith.constant 0 : i32
    return %arg0, %c0_i32 : i32, i32
  }
  func.func @transform_1(%arg0: i32, %arg1: i32) -> (i32, i32) {
    %c0_i32 = arith.constant 0 : i32
    %c0_i32_0 = arith.constant 0 : i32
    return %arg0, %c0_i32 : i32, i32
  }
  func.func @transform_2(%arg0: i32, %arg1: i32) -> (i32, i32, i32) {
    %c0_i32 = arith.constant 0 : i32
    %c0_i32_0 = arith.constant 0 : i32
    return %arg0, %c0_i32, %arg1 : i32, i32, i32
  }
  func.func @transform_3(%arg0: i32, %arg1: i32) -> (i32, i32, i32) {
    %c0_i32 = arith.constant 0 : i32
    %c0_i32_0 = arith.constant 0 : i32
    return %arg0, %arg1, %c0_i32 : i32, i32, i32
  }
  func.func @transform_4(%arg0: i32, %arg1: i32) -> (i32, i32) {
    %c0_i32 = arith.constant 0 : i32
    return %arg0, %arg1 : i32, i32
  }
  func.func @transform_5(%arg0: i32, %arg1: i32) -> (i32, i32) {
    %c0_i32 = arith.constant 0 : i32
    %c0_i32_0 = arith.constant 0 : i32
    %c0_i32_1 = arith.constant 0 : i32
    return %c0_i32, %c0_i32_0 : i32, i32
  }
  func.func @transform_6(%arg0: i32, %arg1: i32) -> (i32, i32) {
    %c0_i32 = arith.constant 0 : i32
    %c0_i32_0 = arith.constant 0 : i32
    %c0_i32_1 = arith.constant 0 : i32
    return %c0_i32, %c0_i32_0 : i32, i32
  }
  func.func @transform_7(%arg0: i32, %arg1: i32) -> (i32, i32) {
    %c0_i32 = arith.constant 0 : i32
    %c0_i32_0 = arith.constant 0 : i32
    %c0_i32_1 = arith.constant 0 : i32
    return %c0_i32, %c0_i32_0 : i32, i32
  }
  func.func @transform_8(%arg0: i32, %arg1: i32) -> (i32, i32) {
    %c0_i32 = arith.constant 0 : i32
    %c0_i32_0 = arith.constant 0 : i32
    %c0_i32_1 = arith.constant 0 : i32
    return %c0_i32, %c0_i32_0 : i32, i32
  }
  func.func @transform_9(%arg0: i32, %arg1: i32) -> (i32, i32) {
    %c0_i32 = arith.constant 0 : i32
    %c0_i32_0 = arith.constant 0 : i32
    return %arg0, %c0_i32 : i32, i32
  }
  func.func @transform_10(%arg0: i32, %arg1: i32) -> (i32, i32) {
    %c0_i32 = arith.constant 0 : i32
    return %arg0, %arg1 : i32, i32
  }
  func.func @transform_11(%arg0: i32, %arg1: i32) -> (i32, i32) {
    %c0_i32 = arith.constant 0 : i32
    %c0_i32_0 = arith.constant 0 : i32
    return %arg0, %c0_i32 : i32, i32
  }
}

</mosaic_0001>

<llo_original>
// kernel: sub.5
$region0: #{sub.5}
  %s0 = inlined_call_operand.vmem [shape: f32[8], index: 0, kind: input, shape index: {}]
  %s1 = inlined_call_operand.vmem [shape: f32[4,2], index: 1, kind: output, shape index: {}]
  $region1: #{sub.5} parent=0
    #allocation0 [shape = 'u8[4096]{0}', space=vmem, size = 0x1000, scoped, tag = 'scoped mem for output reshape']
    #allocation1 [shape = 'u8[4096]{0}', space=vmem, size = 0x1000, scoped, tag = 'scoped mem for input reshape']
    %s3 = ssub.s32 2, 1
    %v4 = vld [vmem:[%s0] sm:%s3]
    %5 = vst [vmem:[#allocation1] sm:%s3] %v4
    %v6 = vld [vmem:[#allocation1] sm:$0x1]
    %vm7 = vcmask 15360
    %8 = vst.msk [vmem:[#allocation0] sm:$0x1] %vm7, %v6
    %v9 = vld [vmem:[#allocation1] sm:$0x1]
    %10 = vrot.lane.b32.xlu0 %v9, 126
    %v11 = vpop.permute.xlu0 %10
    %vm12 = vcmask 15360
    %s13 = scalar_lea.vmem [#allocation0], 1
    %14 = vst.msk [vmem:[%s13] sm:$0x1] %vm12, %v11
    %v15 = vld [vmem:[#allocation1] sm:$0x1]
    %16 = vrot.lane.b32.xlu0 %v15, 124
    %v17 = vpop.permute.xlu0 %16
    %vm18 = vcmask 15360
    %s19 = scalar_lea.vmem [#allocation0], 2
    %20 = vst.msk [vmem:[%s19] sm:$0x1] %vm18, %v17
    %v21 = vld [vmem:[#allocation1] sm:$0x1]
    %22 = vrot.lane.b32.xlu0 %v21, 122
    %v23 = vpop.permute.xlu0 %22
    %vm24 = vcmask 15360
    %s25 = scalar_lea.vmem [#allocation0], 3
    %26 = vst.msk [vmem:[%s25] sm:$0x1] %vm24, %v23
    %s28 = ssub.s32 16, 1
    %v29 = vld [vmem:[#allocation0] sm:%s28]
    %s31 = ssub.s32 16, 1
    %32 = vst [vmem:[%s1] sm:%s31] %v29

// kernel: beam_search_attention_decoder_forward.1
$region0: #{beam_search_attention_decoder_forward.1}
  #allocation0 [shape = 'u32[]', space=smem, size = 0x4, offset = 0x4, fixed_abs, tag = 'smem constant byte address 0x4 - core index']
  #allocation1 [shape = 'u32[72,128]{1,0:T(1,128)}', space=vmem, size = 0x9000, scoped, tag = 'internal scratch']
  #allocation2 [shape = 'f32[8,32]{1,0:T(8,128)}', space=vmem, size = 0x1000, scoped, tag = 'scratch operand']
  #allocation3 [shape = 'f32[8,1]{1,0:T(8,128)}', space=vmem, size = 0x1000, scoped, tag = 'scratch operand']
  #allocation4 [shape = 'f32[8,1]{1,0:T(8,128)}', space=vmem, size = 0x1000, scoped, tag = 'scratch operand']
  #allocation5 [shape = 'f32[8,32]{1,0:T(8,128)}', space=vmem, size = 0x1000, scoped, tag = 'scratch operand']
  %s0 = inlined_call_operand.vmem [shape: f32[8,32], index: 0, kind: input, shape index: {}]
  %s1 = inlined_call_operand.vmem [shape: f32[8,32], index: 1, kind: input, shape index: {}]
  %s2 = inlined_call_operand.vmem [shape: f32[8,32,8], index: 2, kind: input, shape index: {}]
  %s3 = inlined_call_operand.vmem [shape: f32[8,8,32], index: 3, kind: input, shape index: {}]
  %s4 = inlined_call_operand.vmem [shape: f32[8,8], index: 4, kind: input, shape index: {}]
  %s5 = inlined_call_operand.vmem [shape: f32[32,96], index: 5, kind: input, shape index: {}]
  %s6 = inlined_call_operand.vmem [shape: f32[32,96], index: 6, kind: input, shape index: {}]
  %s7 = inlined_call_operand.vmem [shape: f32[1,96], index: 7, kind: input, shape index: {}]
  %s8 = inlined_call_operand.vmem [shape: f32[1,32], index: 8, kind: input, shape index: {}]
  %s9 = inlined_call_operand.vmem [shape: f32[8,64], index: 9, kind: output, shape index: {0}]
  %s10 = inlined_call_operand.vmem [shape: f32[8,8], index: 10, kind: output, shape index: {1}]
  %s11 = inlined_call_operand.vmem [shape: f32[8,1], index: 11, kind: output, shape index: {2}]
  %12 = xla_tuple %s9, %s10, %s11
  %s13 = sld [smem:[#allocation0]]
  $region70: #{beam_search_attention_decoder_forward.1} parent=0
    _
  %s15 = ssub.s32 1, %s13
  %s16 = scalar_select 0, %s15, %s13
  // Predicated region
  $region2: #{beam_search_attention_decoder_forward.1} parent=0 // pred_check
    _
  $region3: #{beam_search_attention_decoder_forward.1} parent=0 // pred_check_branch
    %18 = sbr.rel (0) target = $region5
  $region4: #{beam_search_attention_decoder_forward.1} parent=0 // pred_region
    _
  $region5: #{beam_search_attention_decoder_forward.1} parent=0 // pred_fallthru
    _
  // Predicated region
  $region6: #{beam_search_attention_decoder_forward.1} parent=0 // pred_check
    _
  $region7: #{beam_search_attention_decoder_forward.1} parent=0 // pred_check_branch
    %20 = sbr.rel (0) target = $region9
  $region8: #{beam_search_attention_decoder_forward.1} parent=0 // pred_region
    _
  $region9: #{beam_search_attention_decoder_forward.1} parent=0 // pred_fallthru
    _
  // Predicated region
  $region10: #{beam_search_attention_decoder_forward.1} parent=0 // pred_check
    _
  $region11: #{beam_search_attention_decoder_forward.1} parent=0 // pred_check_branch
    %22 = sbr.rel (0) target = $region13
  $region12: #{beam_search_attention_decoder_forward.1} parent=0 // pred_region
    _
  $region13: #{beam_search_attention_decoder_forward.1} parent=0 // pred_fallthru
    _
  // Predicated region
  $region14: #{beam_search_attention_decoder_forward.1} parent=0 // pred_check
    _
  $region15: #{beam_search_attention_decoder_forward.1} parent=0 // pred_check_branch
    %24 = sbr.rel (0) target = $region17
  $region16: #{beam_search_attention_decoder_forward.1} parent=0 // pred_region
    _
  $region17: #{beam_search_attention_decoder_forward.1} parent=0 // pred_fallthru
    _
  // Predicated region
  $region18: #{beam_search_attention_decoder_forward.1} parent=0 // pred_check
    _
  $region19: #{beam_search_attention_decoder_forward.1} parent=0 // pred_check_branch
    %26 = sbr.rel (0) target = $region21
  $region20: #{beam_search_attention_decoder_forward.1} parent=0 // pred_region
    _
  $region21: #{beam_search_attention_decoder_forward.1} parent=0 // pred_fallthru
    _
  // Predicated region
  $region22: #{beam_search_attention_decoder_forward.1} parent=0 // pred_check
    _
  $region23: #{beam_search_attention_decoder_forward.1} parent=0 // pred_check_branch
    %28 = sbr.rel (0) target = $region25
  $region24: #{beam_search_attention_decoder_forward.1} parent=0 // pred_region
    _
  $region25: #{beam_search_attention_decoder_forward.1} parent=0 // pred_fallthru
    _
  // Predicated region
  $region26: #{beam_search_attention_decoder_forward.1} parent=0 // pred_check
    _
  $region27: #{beam_search_attention_decoder_forward.1} parent=0 // pred_check_branch
    %30 = sbr.rel (0) target = $region29
  $region28: #{beam_search_attention_decoder_forward.1} parent=0 // pred_region
    _
  $region29: #{beam_search_attention_decoder_forward.1} parent=0 // pred_fallthru
    _
  // Predicated region
  $region30: #{beam_search_attention_decoder_forward.1} parent=0 // pred_check
    _
  $region31: #{beam_search_attention_decoder_forward.1} parent=0 // pred_check_branch
    %32 = sbr.rel (0) target = $region33
  $region32: #{beam_search_attention_decoder_forward.1} parent=0 // pred_region
    _
  $region33: #{beam_search_attention_decoder_forward.1} parent=0 // pred_fallthru
    _
  // Predicated region
  $region34: #{beam_search_attention_decoder_forward.1} parent=0 // pred_check
    _
  $region35: #{beam_search_attention_decoder_forward.1} parent=0 // pred_check_branch
    %34 = sbr.rel (0) target = $region37
  $region36: #{beam_search_attention_decoder_forward.1} parent=0 // pred_region
    _
  $region37: #{beam_search_attention_decoder_forward.1} parent=0 // pred_fallthru
    _
  %p35 = scmp.eq.s32.totalorder 0, 0
  // Predicated region
  $region38: #{beam_search_attention_decoder_forward.1} parent=0 // pred_check
    %p36 = pneg %p35
  $region39: #{beam_search_attention_decoder_forward.1} parent=0 // pred_check_branch
    %38 = sbr.rel (%p36) target = $region41
  $region40: #{beam_search_attention_decoder_forward.1} parent=0 // pred_region
    %v39 = vld [vmem:[%s0] sm:$0xff]
    %v40 = vld [vmem:[%s1] sm:$0xff]
    %v41 = vld [vmem:[%s5] sm:$0xff]
    %v42 = vld [vmem:[%s5 + $0x8] sm:$0xff]
    %v43 = vld [vmem:[%s5 + $0x10] sm:$0xff]
    %v44 = vld [vmem:[%s5 + $0x18] sm:$0xff]
    %v45 = vld [vmem:[%s7] sm:$0x1]
    %v47 = vperm.slane %v45, 0
    %vm49 = vcmask 261120
    %v51 = vsel %vm49, %v39, 0
    %53 = vmatpush.msra.mxu0 0.0
    %54 = vmatpush.msra.mxu0 0.0
    %55 = vmatpush.msra.mxu0 0.0
    %56 = vmatpush.msra.mxu0 0.0
    %57 = vmatpush.msra.mxu0 0.0
    %58 = vmatpush.msra.mxu0 0.0
    %59 = vmatpush.msra.mxu0 0.0
    %60 = vmatpush.msra.mxu0 0.0
    %61 = vmatpush.msra.mxu0 0.0
    %62 = vmatpush.msra.mxu0 0.0
    %63 = vmatpush.msra.mxu0 0.0
    %64 = vmatpush.msra.mxu0 0.0
    %65 = vmatpush.msra.mxu0 %v44
    %66 = vmatpush.msra.mxu0 %v43
    %67 = vmatpush.msra.mxu0 %v42
    %68 = vmatpush.msra.mxu0 %v41
    %69 = vmatmul.f32.gmra.mxu0 %v51
    %v70 = vpop.f32.mrf.mxu0
    %v71 = vadd.f32 %v47, %v70
    %72 = vdwg.mxu0
    %v73 = vld [vmem:[%s6] sm:$0xff]
    %v74 = vld [vmem:[%s6 + $0x8] sm:$0xff]
    %v75 = vld [vmem:[%s6 + $0x10] sm:$0xff]
    %v76 = vld [vmem:[%s6 + $0x18] sm:$0xff]
    %v78 = vsel %vm49, %v40, 0
    %80 = vmatpush.msra.mxu0 0.0
    %81 = vmatpush.msra.mxu0 0.0
    %82 = vmatpush.msra.mxu0 0.0
    %83 = vmatpush.msra.mxu0 0.0
    %84 = vmatpush.msra.mxu0 0.0
    %85 = vmatpush.msra.mxu0 0.0
    %86 = vmatpush.msra.mxu0 0.0
    %87 = vmatpush.msra.mxu0 0.0
    %88 = vmatpush.msra.mxu0 0.0
    %89 = vmatpush.msra.mxu0 0.0
    %90 = vmatpush.msra.mxu0 0.0
    %91 = vmatpush.msra.mxu0 0.0
    %92 = vmatpush.msra.mxu0 %v76
    %93 = vmatpush.msra.mxu0 %v75
    %94 = vmatpush.msra.mxu0 %v74
    %95 = vmatpush.msra.mxu0 %v73
    %96 = vmatmul.f32.gmra.mxu0 %v78
    %v97 = vpop.f32.mrf.mxu0
    %v98 = vadd.f32 0.0, %v97
    %99 = vdwg.mxu0
    %v100 = vadd.f32 %v71, %v98
    %v101 = vxor.u32 %v100, 2147483648
    %v102 = vmul.f32 %v101, 1.442695
    %v103 = vpow.pop %v102
    %v104 = vadd.f32 %v103, 1.0
    %v105 = vrcp.pop %v104
    %v106 = vmul.f32 %v104, %v105
    %v107 = vsub.f32 1.0, %v106
    %v108 = vmul.f32 %v105, %v107
    %v109 = vadd.f32 %v105, %v108
    %vm110 = vweird.f32 %v104
    %vm111 = vweird.f32 %v105
    %vm112 = vmor %vm110, %vm111
    %v113 = vsel %vm112, %v105, %v109
    %v114 = vand.u32 2147483647, %v104
    %vm115 = vcmp.eq.f32.partialorder %v114, 8.507059e+37
    %v116 = vand.u32 %v104, 2147483648
    %v117 = vor.u32 1.1754944e-38, %v116
    %v118 = vsel %vm115, %v117, %v113
    %v119 = vmul.f32 1.0, %v118
    %v120 = vld [vmem:[%s8] sm:$0x1]
    %v122 = vperm.slane %v120, 0
    %123 = vrot.lane.b32.xlu0 %v122, 64
    %v124 = vpop.permute.xlu0 %123
    %v126 = vadd.f32 %v98, %v124
    %128 = vrot.lane.b32.xlu0 %v126, 64
    %v129 = vpop.permute.xlu0 %128
    %v131 = vmul.f32 %v119, %v129
    %133 = vrot.lane.b32.xlu0 %v131, 64
    %v134 = vpop.permute.xlu0 %133
    %v136 = vadd.f32 %v71, %v134
    %v137 = vtanh.pop %v136
    %v138 = vsub.f32 1.0, %v119
    %140 = vrot.lane.b32.xlu0 %v137, 96
    %v141 = vpop.permute.xlu0 %140
    %v143 = vmul.f32 %v138, %v141
    %144 = vrot.lane.b32.xlu0 %v40, 32
    %v145 = vpop.permute.xlu0 %144
    %v147 = vmul.f32 %v119, %v145
    %v148 = vadd.f32 %v143, %v147
    %150 = vrot.lane.b32.xlu0 %v148, 96
    %v151 = vpop.permute.xlu0 %150
    %153 = vst.msk [vmem:[#allocation2] sm:$0xff] %vm49, %v151
    %vm154 = vcmask 7168
    %155 = vst.msk [vmem:[#allocation3] sm:$0xff] %vm154, -1e+30
    %156 = vst.msk [vmem:[#allocation4] sm:$0xff] %vm154, 0.0
    %157 = vst.msk [vmem:[#allocation5] sm:$0xff] %vm49, 0.0
  $region41: #{beam_search_attention_decoder_forward.1} parent=0 // pred_fallthru
    _
  %v158 = vld [vmem:[%s2] sm:$0xff]
  %v159 = vld [vmem:[%s2 + $0x8] sm:$0xff]
  %v160 = vld [vmem:[%s2 + $0x10] sm:$0xff]
  %v161 = vld [vmem:[%s2 + $0x18] sm:$0xff]
  %v162 = vld [vmem:[%s2 + $0x20] sm:$0xff]
  %v163 = vld [vmem:[%s2 + $0x28] sm:$0xff]
  %v164 = vld [vmem:[%s2 + $0x30] sm:$0xff]
  %v165 = vld [vmem:[%s2 + $0x38] sm:$0xff]
  %v166 = vld [vmem:[%s2 + $0x40] sm:$0xff]
  %v167 = vld [vmem:[%s2 + $0x48] sm:$0xff]
  %v168 = vld [vmem:[%s2 + $0x50] sm:$0xff]
  %v169 = vld [vmem:[%s2 + $0x58] sm:$0xff]
  %v170 = vld [vmem:[%s2 + $0x60] sm:$0xff]
  %v171 = vld [vmem:[%s2 + $0x68] sm:$0xff]
  %v172 = vld [vmem:[%s2 + $0x70] sm:$0xff]
  %v173 = vld [vmem:[%s2 + $0x78] sm:$0xff]
  %v174 = vld [vmem:[%s2 + $0x80] sm:$0xff]
  %v175 = vld [vmem:[%s2 + $0x88] sm:$0xff]
  %v176 = vld [vmem:[%s2 + $0x90] sm:$0xff]
  %v177 = vld [vmem:[%s2 + $0x98] sm:$0xff]
  %v178 = vld [vmem:[%s2 + $0xa0] sm:$0xff]
  %v179 = vld [vmem:[%s2 + $0xa8] sm:$0xff]
  %v180 = vld [vmem:[%s2 + $0xb0] sm:$0xff]
  %v181 = vld [vmem:[%s2 + $0xb8] sm:$0xff]
  %v182 = vld [vmem:[%s2 + $0xc0] sm:$0xff]
  %v183 = vld [vmem:[%s2 + $0xc8] sm:$0xff]
  %v184 = vld [vmem:[%s2 + $0xd0] sm:$0xff]
  %v185 = vld [vmem:[%s2 + $0xd8] sm:$0xff]
  %v186 = vld [vmem:[%s2 + $0xe0] sm:$0xff]
  %v187 = vld [vmem:[%s2 + $0xe8] sm:$0xff]
  %v188 = vld [vmem:[%s2 + $0xf0] sm:$0xff]
  %v189 = vld [vmem:[%s2 + $0xf8] sm:$0xff]
  %v190 = vld [vmem:[#allocation2] sm:$0xff]
  %v192 = vrot.slane %v190, 1
  %v193 = vrot.slane %v190, 2
  %v194 = vrot.slane %v190, 3
  %v195 = vrot.slane %v190, 4
  %v196 = vrot.slane %v190, 5
  %v197 = vrot.slane %v190, 6
  %v198 = vrot.slane %v190, 7
  %vm199 = vcmask 261120
  %v200 = vsel %vm199, %v190, 0
  %202 = vmatpush.msra.mxu0 0.0
  %203 = vmatpush.msra.mxu0 0.0
  %204 = vmatpush.msra.mxu0 0.0
  %205 = vmatpush.msra.mxu0 0.0
  %206 = vmatpush.msra.mxu0 0.0
  %207 = vmatpush.msra.mxu0 0.0
  %208 = vmatpush.msra.mxu0 0.0
  %209 = vmatpush.msra.mxu0 0.0
  %210 = vmatpush.msra.mxu0 0.0
  %211 = vmatpush.msra.mxu0 0.0
  %212 = vmatpush.msra.mxu0 0.0
  %213 = vmatpush.msra.mxu0 0.0
  %214 = vmatpush.msra.mxu0 %v161
  %215 = vmatpush.msra.mxu0 %v160
  %216 = vmatpush.msra.mxu0 %v159
  %217 = vmatpush.msra.mxu0 %v158
  %218 = vmatmul.f32.gmra.mxu0 %v200
  %v219 = vpop.f32.mrf.mxu0
  %v220 = vadd.f32 0.0, %v219
  %221 = vdwg.mxu0
  %v222 = vsel %vm199, %v192, 0
  %224 = vmatpush.msra.mxu0 0.0
  %225 = vmatpush.msra.mxu0 0.0
  %226 = vmatpush.msra.mxu0 0.0
  %227 = vmatpush.msra.mxu0 0.0
  %228 = vmatpush.msra.mxu0 0.0
  %229 = vmatpush.msra.mxu0 0.0
  %230 = vmatpush.msra.mxu0 0.0
  %231 = vmatpush.msra.mxu0 0.0
  %232 = vmatpush.msra.mxu0 0.0
  %233 = vmatpush.msra.mxu0 0.0
  %234 = vmatpush.msra.mxu0 0.0
  %235 = vmatpush.msra.mxu0 0.0
  %236 = vmatpush.msra.mxu0 %v165
  %237 = vmatpush.msra.mxu0 %v164
  %238 = vmatpush.msra.mxu0 %v163
  %239 = vmatpush.msra.mxu0 %v162
  %240 = vmatmul.f32.gmra.mxu0 %v222
  %v241 = vpop.f32.mrf.mxu0
  %v242 = vadd.f32 0.0, %v241
  %243 = vdwg.mxu0
  %v244 = vsel %vm199, %v193, 0
  %246 = vmatpush.msra.mxu0 0.0
  %247 = vmatpush.msra.mxu0 0.0
  %248 = vmatpush.msra.mxu0 0.0
  %249 = vmatpush.msra.mxu0 0.0
  %250 = vmatpush.msra.mxu0 0.0
  %251 = vmatpush.msra.mxu0 0.0
  %252 = vmatpush.msra.mxu0 0.0
  %253 = vmatpush.msra.mxu0 0.0
  %254 = vmatpush.msra.mxu0 0.0
  %255 = vmatpush.msra.mxu0 0.0
  %256 = vmatpush.msra.mxu0 0.0
  %257 = vmatpush.msra.mxu0 0.0
  %258 = vmatpush.msra.mxu0 %v169
  %259 = vmatpush.msra.mxu0 %v168
  %260 = vmatpush.msra.mxu0 %v167
  %261 = vmatpush.msra.mxu0 %v166
  %262 = vmatmul.f32.gmra.mxu0 %v244
  %v263 = vpop.f32.mrf.mxu0
  %v264 = vadd.f32 0.0, %v263
  %265 = vdwg.mxu0
  %v266 = vsel %vm199, %v194, 0
  %268 = vmatpush.msra.mxu0 0.0
  %269 = vmatpush.msra.mxu0 0.0
  %270 = vmatpush.msra.mxu0 0.0
  %271 = vmatpush.msra.mxu0 0.0
  %272 = vmatpush.msra.mxu0 0.0
  %273 = vmatpush.msra.mxu0 0.0
  %274 = vmatpush.msra.mxu0 0.0
  %275 = vmatpush.msra.mxu0 0.0
  %276 = vmatpush.msra.mxu0 0.0
  %277 = vmatpush.msra.mxu0 0.0
  %278 = vmatpush.msra.mxu0 0.0
  %279 = vmatpush.msra.mxu0 0.0
  %280 = vmatpush.msra.mxu0 %v173
  %281 = vmatpush.msra.mxu0 %v172
  %282 = vmatpush.msra.mxu0 %v171
  %283 = vmatpush.msra.mxu0 %v170
  %284 = vmatmul.f32.gmra.mxu0 %v266
  %v285 = vpop.f32.mrf.mxu0
  %v286 = vadd.f32 0.0, %v285
  %287 = vdwg.mxu0
  %v288 = vsel %vm199, %v195, 0
  %290 = vmatpush.msra.mxu0 0.0
  %291 = vmatpush.msra.mxu0 0.0
  %292 = vmatpush.msra.mxu0 0.0
  %293 = vmatpush.msra.mxu0 0.0
  %294 = vmatpush.msra.mxu0 0.0
  %295 = vmatpush.msra.mxu0 0.0
  %296 = vmatpush.msra.mxu0 0.0
  %297 = vmatpush.msra.mxu0 0.0
  %298 = vmatpush.msra.mxu0 0.0
  %299 = vmatpush.msra.mxu0 0.0
  %300 = vmatpush.msra.mxu0 0.0
  %301 = vmatpush.msra.mxu0 0.0
  %302 = vmatpush.msra.mxu0 %v177
  %303 = vmatpush.msra.mxu0 %v176
  %304 = vmatpush.msra.mxu0 %v175
  %305 = vmatpush.msra.mxu0 %v174
  %306 = vmatmul.f32.gmra.mxu0 %v288
  %v307 = vpop.f32.mrf.mxu0
  %v308 = vadd.f32 0.0, %v307
  %309 = vdwg.mxu0
  %v310 = vsel %vm199, %v196, 0
  %312 = vmatpush.msra.mxu0 0.0
  %313 = vmatpush.msra.mxu0 0.0
  %314 = vmatpush.msra.mxu0 0.0
  %315 = vmatpush.msra.mxu0 0.0
  %316 = vmatpush.msra.mxu0 0.0
  %317 = vmatpush.msra.mxu0 0.0
  %318 = vmatpush.msra.mxu0 0.0
  %319 = vmatpush.msra.mxu0 0.0
  %320 = vmatpush.msra.mxu0 0.0
  %321 = vmatpush.msra.mxu0 0.0
  %322 = vmatpush.msra.mxu0 0.0
  %323 = vmatpush.msra.mxu0 0.0
  %324 = vmatpush.msra.mxu0 %v181
  %325 = vmatpush.msra.mxu0 %v180
  %326 = vmatpush.msra.mxu0 %v179
  %327 = vmatpush.msra.mxu0 %v178
  %328 = vmatmul.f32.gmra.mxu0 %v310
  %v329 = vpop.f32.mrf.mxu0
  %v330 = vadd.f32 0.0, %v329
  %331 = vdwg.mxu0
  %v332 = vsel %vm199, %v197, 0
  %334 = vmatpush.msra.mxu0 0.0
  %335 = vmatpush.msra.mxu0 0.0
  %336 = vmatpush.msra.mxu0 0.0
  %337 = vmatpush.msra.mxu0 0.0
  %338 = vmatpush.msra.mxu0 0.0
  %339 = vmatpush.msra.mxu0 0.0
  %340 = vmatpush.msra.mxu0 0.0
  %341 = vmatpush.msra.mxu0 0.0
  %342 = vmatpush.msra.mxu0 0.0
  %343 = vmatpush.msra.mxu0 0.0
  %344 = vmatpush.msra.mxu0 0.0
  %345 = vmatpush.msra.mxu0 0.0
  %346 = vmatpush.msra.mxu0 %v185
  %347 = vmatpush.msra.mxu0 %v184
  %348 = vmatpush.msra.mxu0 %v183
  %349 = vmatpush.msra.mxu0 %v182
  %350 = vmatmul.f32.gmra.mxu0 %v332
  %v351 = vpop.f32.mrf.mxu0
  %v352 = vadd.f32 0.0, %v351
  %353 = vdwg.mxu0
  %v354 = vsel %vm199, %v198, 0
  %356 = vmatpush.msra.mxu0 0.0
  %357 = vmatpush.msra.mxu0 0.0
  %358 = vmatpush.msra.mxu0 0.0
  %359 = vmatpush.msra.mxu0 0.0
  %360 = vmatpush.msra.mxu0 0.0
  %361 = vmatpush.msra.mxu0 0.0
  %362 = vmatpush.msra.mxu0 0.0
  %363 = vmatpush.msra.mxu0 0.0
  %364 = vmatpush.msra.mxu0 0.0
  %365 = vmatpush.msra.mxu0 0.0
  %366 = vmatpush.msra.mxu0 0.0
  %367 = vmatpush.msra.mxu0 0.0
  %368 = vmatpush.msra.mxu0 %v189
  %369 = vmatpush.msra.mxu0 %v188
  %370 = vmatpush.msra.mxu0 %v187
  %371 = vmatpush.msra.mxu0 %v186
  %372 = vmatmul.f32.gmra.mxu0 %v354
  %v373 = vpop.f32.mrf.mxu0
  %v374 = vadd.f32 0.0, %v373
  %375 = vdwg.mxu0
  %v376 = vld [vmem:[%s4] sm:$0xff]
  %v378 = vrot.slane %v376, 1
  %v379 = vrot.slane %v376, 2
  %v380 = vrot.slane %v376, 3
  %v381 = vrot.slane %v376, 4
  %v382 = vrot.slane %v376, 5
  %v383 = vrot.slane %v376, 6
  %v384 = vrot.slane %v376, 7
  %v393 = vadd.f32 %v220, %v376
  %v394 = vadd.f32 %v242, %v378
  %v395 = vadd.f32 %v264, %v379
  %v396 = vadd.f32 %v286, %v380
  %v397 = vadd.f32 %v308, %v381
  %v398 = vadd.f32 %v330, %v382
  %v399 = vadd.f32 %v352, %v383
  %v400 = vadd.f32 %v374, %v384
  %v409 = vrot.slane %v394, 7
  %vm410 = vcmask 1041409
  %v411 = vsel %vm410, %v409, %v393
  %v412 = vrot.slane %v395, 6
  %vm413 = vcmask 1042434
  %v414 = vsel %vm413, %v412, %v411
  %v415 = vrot.slane %v396, 5
  %vm416 = vcmask 1043459
  %v417 = vsel %vm416, %v415, %v414
  %v418 = vrot.slane %v397, 4
  %vm419 = vcmask 1044484
  %v420 = vsel %vm419, %v418, %v417
  %v421 = vrot.slane %v398, 3
  %vm422 = vcmask 1045509
  %v423 = vsel %vm422, %v421, %v420
  %v424 = vrot.slane %v399, 2
  %vm425 = vcmask 1046534
  %v426 = vsel %vm425, %v424, %v423
  %v427 = vrot.slane %v400, 1
  %vm428 = vcmask 1047559
  %v429 = vsel %vm428, %v427, %v426
  %vm431 = vcmask 64512
  %432 = vst.msk [vmem:[%s10] sm:$0xff] %vm431, %v429
  %v433 = vld [vmem:[#allocation3] sm:$0xff]
  %v434 = vsel %vm431, %v429, -inf
  %435 = vmax.xlane.f32.xlu0 %v434
  %v436 = vpop.xlane.xlu0 %435
  %v437 = vmax.f32 %v433, %v436
  %v438 = vsub.f32 %v433, %v437
  %v439 = vmul.f32 %v438, 1.442695
  %v440 = vpow.pop %v439
  %442 = vset.pattern.permute.xlu0 0
  %443 = vperm.xlu0 %442, %v437
  %v444 = vpop.permute.xlu0 %443
  %v445 = vrot.slane %v444, 1
  %v446 = vrot.slane %v444, 2
  %v447 = vrot.slane %v444, 3
  %v448 = vrot.slane %v444, 4
  %v449 = vrot.slane %v444, 5
  %v450 = vrot.slane %v444, 6
  %v451 = vrot.slane %v444, 7
  %v460 = vsub.f32 %v393, %v444
  %v461 = vsub.f32 %v394, %v445
  %v462 = vsub.f32 %v395, %v446
  %v463 = vsub.f32 %v396, %v447
  %v464 = vsub.f32 %v397, %v448
  %v465 = vsub.f32 %v398, %v449
  %v466 = vsub.f32 %v399, %v450
  %v467 = vsub.f32 %v400, %v451
  %v468 = vmul.f32 %v460, 1.442695
  %v469 = vpow.pop %v468
  %v470 = vmul.f32 %v461, 1.442695
  %v471 = vpow.pop %v470
  %v472 = vmul.f32 %v462, 1.442695
  %v473 = vpow.pop %v472
  %v474 = vmul.f32 %v463, 1.442695
  %v475 = vpow.pop %v474
  %v476 = vmul.f32 %v464, 1.442695
  %v477 = vpow.pop %v476
  %v478 = vmul.f32 %v465, 1.442695
  %v479 = vpow.pop %v478
  %v480 = vmul.f32 %v466, 1.442695
  %v481 = vpow.pop %v480
  %v482 = vmul.f32 %v467, 1.442695
  %v483 = vpow.pop %v482
  %v484 = vld [vmem:[#allocation4] sm:$0xff]
  %v485 = vmul.f32 %v440, %v484
  %v494 = vrot.slane %v471, 7
  %v495 = vsel %vm410, %v494, %v469
  %v496 = vrot.slane %v473, 6
  %v497 = vsel %vm413, %v496, %v495
  %v498 = vrot.slane %v475, 5
  %v499 = vsel %vm416, %v498, %v497
  %v500 = vrot.slane %v477, 4
  %v501 = vsel %vm419, %v500, %v499
  %v502 = vrot.slane %v479, 3
  %v503 = vsel %vm422, %v502, %v501
  %v504 = vrot.slane %v481, 2
  %v505 = vsel %vm425, %v504, %v503
  %v506 = vrot.slane %v483, 1
  %v507 = vsel %vm428, %v506, %v505
  %v509 = vsel %vm431, %v507, 0.0
  %510 = vadd.xlane.f32.xlu0 %v509
  %v511 = vpop.xlane.xlu0 %510
  %v512 = vadd.f32 %v485, %v511
  %vm513 = vcmask 7168
  %514 = vst.msk [vmem:[#allocation4] sm:$0xff] %vm513, %v512
  %v515 = vld [vmem:[#allocation5] sm:$0xff]
  %517 = vset.pattern.permute.xlu0 0
  %518 = vperm.xlu0 %517, %v440
  %v519 = vpop.permute.xlu0 %518
  %v521 = vmul.f32 %v519, %v515
  %v522 = vld [vmem:[%s3] sm:$0xff]
  %v523 = vld [vmem:[%s3 + $0x8] sm:$0xff]
  %v524 = vld [vmem:[%s3 + $0x10] sm:$0xff]
  %v525 = vld [vmem:[%s3 + $0x18] sm:$0xff]
  %v526 = vld [vmem:[%s3 + $0x20] sm:$0xff]
  %v527 = vld [vmem:[%s3 + $0x28] sm:$0xff]
  %v528 = vld [vmem:[%s3 + $0x30] sm:$0xff]
  %v529 = vld [vmem:[%s3 + $0x38] sm:$0xff]
  %v530 = vsel %vm431, %v469, 0
  %532 = vmatpush.msra.mxu0 0.0
  %533 = vmatpush.msra.mxu0 0.0
  %534 = vmatpush.msra.mxu0 0.0
  %535 = vmatpush.msra.mxu0 0.0
  %536 = vmatpush.msra.mxu0 0.0
  %537 = vmatpush.msra.mxu0 0.0
  %538 = vmatpush.msra.mxu0 0.0
  %539 = vmatpush.msra.mxu0 0.0
  %540 = vmatpush.msra.mxu0 0.0
  %541 = vmatpush.msra.mxu0 0.0
  %542 = vmatpush.msra.mxu0 0.0
  %543 = vmatpush.msra.mxu0 0.0
  %544 = vmatpush.msra.mxu0 0.0
  %545 = vmatpush.msra.mxu0 0.0
  %546 = vmatpush.msra.mxu0 0.0
  %547 = vmatpush.msra.mxu0 %v522
  %548 = vmatmul.f32.gmra.mxu0 %v530
  %v549 = vpop.f32.mrf.mxu0
  %v550 = vadd.f32 0.0, %v549
  %551 = vdwg.mxu0
  %v552 = vsel %vm431, %v471, 0
  %554 = vmatpush.msra.mxu0 0.0
  %555 = vmatpush.msra.mxu0 0.0
  %556 = vmatpush.msra.mxu0 0.0
  %557 = vmatpush.msra.mxu0 0.0
  %558 = vmatpush.msra.mxu0 0.0
  %559 = vmatpush.msra.mxu0 0.0
  %560 = vmatpush.msra.mxu0 0.0
  %561 = vmatpush.msra.mxu0 0.0
  %562 = vmatpush.msra.mxu0 0.0
  %563 = vmatpush.msra.mxu0 0.0
  %564 = vmatpush.msra.mxu0 0.0
  %565 = vmatpush.msra.mxu0 0.0
  %566 = vmatpush.msra.mxu0 0.0
  %567 = vmatpush.msra.mxu0 0.0
  %568 = vmatpush.msra.mxu0 0.0
  %569 = vmatpush.msra.mxu0 %v523
  %570 = vmatmul.f32.gmra.mxu0 %v552
  %v571 = vpop.f32.mrf.mxu0
  %v572 = vadd.f32 0.0, %v571
  %573 = vdwg.mxu0
  %v574 = vsel %vm431, %v473, 0
  %576 = vmatpush.msra.mxu0 0.0
  %577 = vmatpush.msra.mxu0 0.0
  %578 = vmatpush.msra.mxu0 0.0
  %579 = vmatpush.msra.mxu0 0.0
  %580 = vmatpush.msra.mxu0 0.0
  %581 = vmatpush.msra.mxu0 0.0
  %582 = vmatpush.msra.mxu0 0.0
  %583 = vmatpush.msra.mxu0 0.0
  %584 = vmatpush.msra.mxu0 0.0
  %585 = vmatpush.msra.mxu0 0.0
  %586 = vmatpush.msra.mxu0 0.0
  %587 = vmatpush.msra.mxu0 0.0
  %588 = vmatpush.msra.mxu0 0.0
  %589 = vmatpush.msra.mxu0 0.0
  %590 = vmatpush.msra.mxu0 0.0
  %591 = vmatpush.msra.mxu0 %v524
  %592 = vmatmul.f32.gmra.mxu0 %v574
  %v593 = vpop.f32.mrf.mxu0
  %v594 = vadd.f32 0.0, %v593
  %595 = vdwg.mxu0
  %v596 = vsel %vm431, %v475, 0
  %598 = vmatpush.msra.mxu0 0.0
  %599 = vmatpush.msra.mxu0 0.0
  %600 = vmatpush.msra.mxu0 0.0
  %601 = vmatpush.msra.mxu0 0.0
  %602 = vmatpush.msra.mxu0 0.0
  %603 = vmatpush.msra.mxu0 0.0
  %604 = vmatpush.msra.mxu0 0.0
  %605 = vmatpush.msra.mxu0 0.0
  %606 = vmatpush.msra.mxu0 0.0
  %607 = vmatpush.msra.mxu0 0.0
  %608 = vmatpush.msra.mxu0 0.0
  %609 = vmatpush.msra.mxu0 0.0
  %610 = vmatpush.msra.mxu0 0.0
  %611 = vmatpush.msra.mxu0 0.0
  %612 = vmatpush.msra.mxu0 0.0
  %613 = vmatpush.msra.mxu0 %v525
  %614 = vmatmul.f32.gmra.mxu0 %v596
  %v615 = vpop.f32.mrf.mxu0
  %v616 = vadd.f32 0.0, %v615
  %617 = vdwg.mxu0
  %v618 = vsel %vm431, %v477, 0
  %620 = vmatpush.msra.mxu0 0.0
  %621 = vmatpush.msra.mxu0 0.0
  %622 = vmatpush.msra.mxu0 0.0
  %623 = vmatpush.msra.mxu0 0.0
  %624 = vmatpush.msra.mxu0 0.0
  %625 = vmatpush.msra.mxu0 0.0
  %626 = vmatpush.msra.mxu0 0.0
  %627 = vmatpush.msra.mxu0 0.0
  %628 = vmatpush.msra.mxu0 0.0
  %629 = vmatpush.msra.mxu0 0.0
  %630 = vmatpush.msra.mxu0 0.0
  %631 = vmatpush.msra.mxu0 0.0
  %632 = vmatpush.msra.mxu0 0.0
  %633 = vmatpush.msra.mxu0 0.0
  %634 = vmatpush.msra.mxu0 0.0
  %635 = vmatpush.msra.mxu0 %v526
  %636 = vmatmul.f32.gmra.mxu0 %v618
  %v637 = vpop.f32.mrf.mxu0
  %v638 = vadd.f32 0.0, %v637
  %639 = vdwg.mxu0
  %v640 = vsel %vm431, %v479, 0
  %642 = vmatpush.msra.mxu0 0.0
  %643 = vmatpush.msra.mxu0 0.0
  %644 = vmatpush.msra.mxu0 0.0
  %645 = vmatpush.msra.mxu0 0.0
  %646 = vmatpush.msra.mxu0 0.0
  %647 = vmatpush.msra.mxu0 0.0
  %648 = vmatpush.msra.mxu0 0.0
  %649 = vmatpush.msra.mxu0 0.0
  %650 = vmatpush.msra.mxu0 0.0
  %651 = vmatpush.msra.mxu0 0.0
  %652 = vmatpush.msra.mxu0 0.0
  %653 = vmatpush.msra.mxu0 0.0
  %654 = vmatpush.msra.mxu0 0.0
  %655 = vmatpush.msra.mxu0 0.0
  %656 = vmatpush.msra.mxu0 0.0
  %657 = vmatpush.msra.mxu0 %v527
  %658 = vmatmul.f32.gmra.mxu0 %v640
  %v659 = vpop.f32.mrf.mxu0
  %v660 = vadd.f32 0.0, %v659
  %661 = vdwg.mxu0
  %v662 = vsel %vm431, %v481, 0
  %664 = vmatpush.msra.mxu0 0.0
  %665 = vmatpush.msra.mxu0 0.0
  %666 = vmatpush.msra.mxu0 0.0
  %667 = vmatpush.msra.mxu0 0.0
  %668 = vmatpush.msra.mxu0 0.0
  %669 = vmatpush.msra.mxu0 0.0
  %670 = vmatpush.msra.mxu0 0.0
  %671 = vmatpush.msra.mxu0 0.0
  %672 = vmatpush.msra.mxu0 0.0
  %673 = vmatpush.msra.mxu0 0.0
  %674 = vmatpush.msra.mxu0 0.0
  %675 = vmatpush.msra.mxu0 0.0
  %676 = vmatpush.msra.mxu0 0.0
  %677 = vmatpush.msra.mxu0 0.0
  %678 = vmatpush.msra.mxu0 0.0
  %679 = vmatpush.msra.mxu0 %v528
  %680 = vmatmul.f32.gmra.mxu0 %v662
  %v681 = vpop.f32.mrf.mxu0
  %v682 = vadd.f32 0.0, %v681
  %683 = vdwg.mxu0
  %v684 = vsel %vm431, %v483, 0
  %686 = vmatpush.msra.mxu0 0.0
  %687 = vmatpush.msra.mxu0 0.0
  %688 = vmatpush.msra.mxu0 0.0
  %689 = vmatpush.msra.mxu0 0.0
  %690 = vmatpush.msra.mxu0 0.0
  %691 = vmatpush.msra.mxu0 0.0
  %692 = vmatpush.msra.mxu0 0.0
  %693 = vmatpush.msra.mxu0 0.0
  %694 = vmatpush.msra.mxu0 0.0
  %695 = vmatpush.msra.mxu0 0.0
  %696 = vmatpush.msra.mxu0 0.0
  %697 = vmatpush.msra.mxu0 0.0
  %698 = vmatpush.msra.mxu0 0.0
  %699 = vmatpush.msra.mxu0 0.0
  %700 = vmatpush.msra.mxu0 0.0
  %701 = vmatpush.msra.mxu0 %v529
  %702 = vmatmul.f32.gmra.mxu0 %v684
  %v703 = vpop.f32.mrf.mxu0
  %v704 = vadd.f32 0.0, %v703
  %705 = vdwg.mxu0
  %v714 = vrot.slane %v572, 7
  %v715 = vsel %vm410, %v714, %v550
  %v716 = vrot.slane %v594, 6
  %v717 = vsel %vm413, %v716, %v715
  %v718 = vrot.slane %v616, 5
  %v719 = vsel %vm416, %v718, %v717
  %v720 = vrot.slane %v638, 4
  %v721 = vsel %vm419, %v720, %v719
  %v722 = vrot.slane %v660, 3
  %v723 = vsel %vm422, %v722, %v721
  %v724 = vrot.slane %v682, 2
  %v725 = vsel %vm425, %v724, %v723
  %v726 = vrot.slane %v704, 1
  %v727 = vsel %vm428, %v726, %v725
  %v729 = vadd.f32 %v521, %v727
  %730 = vst.msk [vmem:[#allocation5] sm:$0xff] %vm199, %v729
  %731 = vst.msk [vmem:[#allocation3] sm:$0xff] %vm513, %v437
  // Predicated region
  $region42: #{beam_search_attention_decoder_forward.1} parent=0 // pred_check
    %p732 = pneg %p35
  $region43: #{beam_search_attention_decoder_forward.1} parent=0 // pred_check_branch
    %734 = sbr.rel (%p732) target = $region45
  $region44: #{beam_search_attention_decoder_forward.1} parent=0 // pred_region
    %v735 = vld [vmem:[#allocation4] sm:$0xff]
    %v736 = vmax.f32 %v735, 1e-30
    %v737 = vld [vmem:[#allocation5] sm:$0xff]
    %739 = vset.pattern.permute.xlu0 0
    %740 = vperm.xlu0 %739, %v736
    %v741 = vpop.permute.xlu0 %740
    %v743 = vrcp.pop %v741
    %v744 = vmul.f32 %v741, %v743
    %v745 = vsub.f32 1.0, %v744
    %v746 = vmul.f32 %v743, %v745
    %v747 = vadd.f32 %v743, %v746
    %vm748 = vweird.f32 %v741
    %vm749 = vweird.f32 %v743
    %vm750 = vmor %vm748, %vm749
    %v751 = vsel %vm750, %v743, %v747
    %v752 = vand.u32 2147483647, %v741
    %vm753 = vcmp.eq.f32.partialorder %v752, 8.507059e+37
    %v754 = vand.u32 %v741, 2147483648
    %v755 = vor.u32 1.1754944e-38, %v754
    %v756 = vsel %vm753, %v755, %v751
    %v757 = vmul.f32 %v737, %v756
    %v758 = vld [vmem:[#allocation2] sm:$0xff]
    %760 = vrot.lane.b32.xlu0 %v758, 32
    %v761 = vpop.permute.xlu0 %760
    %v763 = vsel %vm199, %v757, %v761
    %vm764 = vcmask 523264
    %765 = vst.msk [vmem:[%s9] sm:$0xff] %vm764, %v763
    %v766 = vld [vmem:[#allocation3] sm:$0xff]
    %v767 = vlog2.pop %v736
    %v768 = vmul.f32 %v767, 0.6931472
    %v769 = vadd.f32 %v766, %v768
    %770 = vst.msk [vmem:[%s11] sm:$0xff] %vm513, %v769
  $region45: #{beam_search_attention_decoder_forward.1} parent=0 // pred_fallthru
    _
  // Predicated region
  $region46: #{beam_search_attention_decoder_forward.1} parent=0 // pred_check
    _
  $region47: #{beam_search_attention_decoder_forward.1} parent=0 // pred_check_branch
    %772 = sbr.rel (0) target = $region49
  $region48: #{beam_search_attention_decoder_forward.1} parent=0 // pred_region
    _
  $region49: #{beam_search_attention_decoder_forward.1} parent=0 // pred_fallthru
    _
  // Predicated region
  $region50: #{beam_search_attention_decoder_forward.1} parent=0 // pred_check
    _
  $region51: #{beam_search_attention_decoder_forward.1} parent=0 // pred_check_branch
    %774 = sbr.rel (0) target = $region53
  $region52: #{beam_search_attention_decoder_forward.1} parent=0 // pred_region
    _
  $region53: #{beam_search_attention_decoder_forward.1} parent=0 // pred_fallthru
    _
  // Predicated region
  $region54: #{beam_search_attention_decoder_forward.1} parent=0 // pred_check
    _
  $region55: #{beam_search_attention_decoder_forward.1} parent=0 // pred_check_branch
    %776 = sbr.rel (0) target = $region57
  $region56: #{beam_search_attention_decoder_forward.1} parent=0 // pred_region
    _
  $region57: #{beam_search_attention_decoder_forward.1} parent=0 // pred_fallthru
    _
  // Predicated region
  $region58: #{beam_search_attention_decoder_forward.1} parent=0 // pred_check
    _
  $region59: #{beam_search_attention_decoder_forward.1} parent=0 // pred_check_branch
    %778 = sbr.rel (0) target = $region61
  $region60: #{beam_search_attention_decoder_forward.1} parent=0 // pred_region
    _
  $region61: #{beam_search_attention_decoder_forward.1} parent=0 // pred_fallthru
    _
  // Predicated region
  $region62: #{beam_search_attention_decoder_forward.1} parent=0 // pred_check
    _
  $region63: #{beam_search_attention_decoder_forward.1} parent=0 // pred_check_branch
    %780 = sbr.rel (0) target = $region65
  $region64: #{beam_search_attention_decoder_forward.1} parent=0 // pred_region
    _
  $region65: #{beam_search_attention_decoder_forward.1} parent=0 // pred_fallthru
    _
  // Predicated region
  $region66: #{beam_search_attention_decoder_forward.1} parent=0 // pred_check
    _
  $region67: #{beam_search_attention_decoder_forward.1} parent=0 // pred_check_branch
    %782 = sbr.rel (0) target = $region69
  $region68: #{beam_search_attention_decoder_forward.1} parent=0 // pred_region
    _
  $region69: #{beam_search_attention_decoder_forward.1} parent=0 // pred_fallthru
    _

</llo_original>
